<compile_context>
chip_gen: v7x
topology: tpu7x:2x2x1
jax: 0.10.0
libtpu: 0.0.40
codegen_flags: <defaults>
</compile_context>

<pallas_src>
import functools
import math

import jax
import jax.numpy as jnp
from jax.experimental import pallas as pl
from jax.experimental.pallas import tpu as pltpu


def _cdiv(a, b):
    return -(-a // b)


def _round_up(a, b):
    return _cdiv(a, b) * b


def _chip_defaults():
    """Best-effort chip detection; conservative defaults if unknown."""
    kind = ""
    try:
        dev = jax.devices()[0]
        if dev.platform == "tpu":
            kind = dev.device_kind.lower()
    except Exception:
        pass
    is_v5e = ("v5e" in kind) or ("v5 lite" in kind) or ("v5litepod" in kind)
    is_v7 = "v7" in kind
    # v4 / v5p / v7x expose two TensorCores that "parallel" grid axes shard over.
    two_cores = is_v7 or ("v4" in kind) or ("v5p" in kind)
    block_b = 128 if is_v5e else 256
    if is_v7:
        vmem_cap = 52 * 2**20       # 64 MiB physical per TC: leave headroom
    else:
        vmem_cap = 100 * 2**20      # 128 MiB physical (v4/v5e/v5p/v6e)
    bf16_eup = not is_v5e           # v5e has no bf16 VPU/EUP path
    return block_b, (2 if two_cores else 1), vmem_cap, bf16_eup


def lstm_cell_kernel(x_ref, hx_ref, cx_ref, w_ih_ref, w_hh_ref, b_ref,
                     hy_ref, cy_ref, *, hidden_size, gate_dtype):
    """One batch tile of the LSTMCell update.

    gates(f32) = x @ W_ih + hx @ W_hh + (b_ih + b_hh), with columns
    pre-ordered as [ingate | forgetgate | outgate | cellgate].
    """
    H = hidden_size

    # Two MXU passes accumulating into the same f32 gates (no wrapper concat).
    gates = jnp.dot(x_ref[...], w_ih_ref[...], preferred_element_type=jnp.float32)
    gates = gates + jnp.dot(hx_ref[...], w_hh_ref[...],
                            preferred_element_type=jnp.float32)
    gates = gates + b_ref[...]              # (1, 4H) broadcasts over batch tile

    # Contiguous transcendentals: one sigmoid over [i|f|o], one tanh over [g].
    g_nl = gates.astype(gate_dtype)
    sig = jax.nn.sigmoid(g_nl[:, :3 * H]).astype(jnp.float32)
    cellgate = jnp.tanh(g_nl[:, 3 * H:]).astype(jnp.float32)

    ingate = sig[:, 0 * H:1 * H]
    forgetgate = sig[:, 1 * H:2 * H]
    outgate = sig[:, 2 * H:3 * H]

    # Cell update stays f32 on every chip (v5e has no bf16 VPU/EUP path).
    cy = forgetgate * cx_ref[...].astype(jnp.float32) + ingate * cellgate
    hy = outgate * jnp.tanh(cy)

    cy_ref[...] = cy.astype(cy_ref.dtype)
    hy_ref[...] = hy.astype(hy_ref.dtype)


def prepare_lstm_params(w_ih, b_ih, w_hh, b_hh, matmul_dtype=jnp.bfloat16):
    """One-time (hoisted) parameter prep -- NOT called per timestep.

    w_ih: (4H, input_size), w_hh: (4H, H) in PyTorch nn.Linear layout.
    Returns:
      w_ih_t: (input_size, 4H) in matmul_dtype
      w_hh_t: (H, 4H)          in matmul_dtype
      bias:   (1, 4H)          float32   (b_ih + b_hh)
    with the 4H axis reordered from PyTorch's [i|f|g|o] to [i|f|o|g] so the
    three sigmoid gates are contiguous inside the kernel.
    """
    four_h = w_ih.shape[0]

    def reorder(v):  # reorder leading 4H axis: [i|f|g|o] -> [i|f|o|g]
        i, f, g, o = jnp.split(v, 4, axis=0)
        return jnp.concatenate([i, f, o, g], axis=0)

    w_ih_t = reorder(w_ih).T.astype(matmul_dtype)
    w_hh_t = reorder(w_hh).T.astype(matmul_dtype)
    bias = reorder(b_ih.astype(jnp.float32) + b_hh.astype(jnp.float32))
    bias = bias.reshape(1, four_h)
    # NOTE: production configs with an MXU-unaligned input_size may pad the
    # contraction rows of w_ih_t here (and x once, outside the step loop).
    return w_ih_t, w_hh_t, bias


def _vmem_estimate(bm, in_size, H, w_itemsize, state_itemsize, gate_itemsize,
                   n_weight_buffers):
    four_h = 4 * H
    act_tiles = 2 * bm * (in_size + H) * w_itemsize     # x / hx (double-buffered)
    cx_tiles = 2 * bm * H * state_itemsize
    out_tiles = 2 * 2 * bm * H * state_itemsize          # hy / cy tiles
    weights = n_weight_buffers * (in_size + H) * four_h * w_itemsize
    bias = n_weight_buffers * four_h * 4
    gates = bm * four_h * 4                               # f32 gates intermediate
    gates += bm * four_h * gate_itemsize                  # sigmoid/tanh outputs
    temps = 4 * bm * H * 4                                # slice copies, f32 cy/hy
    return act_tiles + cx_tiles + out_tiles + weights + bias + gates + temps


def lstm_cell(x, hx, cx, w_ih_t, w_hh_t, bias, *, block_b=None):
    """LSTMCell forward.  w_ih_t / w_hh_t / bias come from prepare_lstm_params().

    Returns (hy, (hy, cy)), matching the PyTorch module.
    NOTE: call eagerly (pallas_call compiles itself); the Buffered(1) fallback
    below only triggers reliably outside an enclosing jit.
    """
    B, in_size = x.shape
    H = hx.shape[-1]
    four_h = 4 * H
    out_dtype = x.dtype

    default_block_b, num_cores, vmem_cap, bf16_eup = _chip_defaults()
    if block_b is None:
        block_b = default_block_b

    matmul_dtype = w_hh_t.dtype
    is_bf16_matmul = jnp.dtype(matmul_dtype) == jnp.dtype(jnp.bfloat16)
    gate_dtype = jnp.bfloat16 if (bf16_eup and is_bf16_matmul) else jnp.float32

    w_itemsize = jnp.dtype(matmul_dtype).itemsize
    state_itemsize = jnp.dtype(out_dtype).itemsize
    gate_itemsize = jnp.dtype(gate_dtype).itemsize
    row_align = 16 if w_itemsize < 4 else 8     # bf16 sublane packing

    # ---- adaptive batch tile: minimal padding, >=2 tiles on 2-TC chips ----
    n_tiles = max(1, _cdiv(B, block_b))
    if num_cores > 1 and B > row_align:
        n_tiles = max(n_tiles, num_cores)       # keep both TensorCores busy
    bm = min(block_b, _round_up(_cdiv(B, n_tiles), row_align))
    bm = max(bm, row_align)

    # Shrink the batch tile if the explicit VMEM estimate exceeds the cap.
    def est(bm_, n_w_buf=1):
        return _vmem_estimate(bm_, in_size, H, w_itemsize, state_itemsize,
                              gate_itemsize, n_w_buf)

    while est(bm) > vmem_cap and bm > row_align:
        bm = max(row_align, _round_up(bm // 2, row_align))

    n_tiles = _cdiv(B, bm)
    b_pad = n_tiles * bm

    # 25% margin over the estimate (covers the double-buffered fallback too),
    # clamped to the per-chip cap.
    vmem_limit = int(min(vmem_cap, max(16 * 2**20, est(bm, 2) * 5 // 4)))

    x_in = x.astype(matmul_dtype)
    hx_in = hx.astype(matmul_dtype)
    cx_in = cx
    if b_pad != B:
        pad = ((0, b_pad - B), (0, 0))
        x_in = jnp.pad(x_in, pad)
        hx_in = jnp.pad(hx_in, pad)
        cx_in = jnp.pad(cx_in, pad)

    kernel = functools.partial(lstm_cell_kernel, hidden_size=H,
                               gate_dtype=gate_dtype)

    def call(single_buffer_weights):
        def resident_spec(shape):
            # Constant index_map => the block never changes; one buffer is
            # enough.  Fall back to the default (double-buffered) spec if this
            # JAX build rejects Buffered(1).
            if single_buffer_weights and hasattr(pl, "Buffered"):
                try:
                    return pl.BlockSpec(shape, lambda i: (0, 0),
                                        pipeline_mode=pl.Buffered(1))
                except TypeError:
                    pass
            return pl.BlockSpec(shape, lambda i: (0, 0))

        return pl.pallas_call(
            kernel,
            out_shape=(
                jax.ShapeDtypeStruct((b_pad, H), out_dtype),
                jax.ShapeDtypeStruct((b_pad, H), out_dtype),
            ),
            grid=(n_tiles,),
            in_specs=[
                pl.BlockSpec((bm, in_size), lambda i: (i, 0)),   # x batch tile
                pl.BlockSpec((bm, H), lambda i: (i, 0)),         # hx batch tile
                pl.BlockSpec((bm, H), lambda i: (i, 0)),         # cx batch tile
                resident_spec((in_size, four_h)),                # W_ih (resident)
                resident_spec((H, four_h)),                      # W_hh (resident)
                resident_spec((1, four_h)),                      # bias (resident)
            ],
            out_specs=(
                pl.BlockSpec((bm, H), lambda i: (i, 0)),
                pl.BlockSpec((bm, H), lambda i: (i, 0)),
            ),
            compiler_params=pltpu.CompilerParams(
                dimension_semantics=("parallel",),
                vmem_limit_bytes=vmem_limit,
            ),
        )(x_in, hx_in, cx_in, w_ih_t, w_hh_t, bias)

    try:
        hy, cy = call(single_buffer_weights=True)
    except Exception:
        # Safety net: default double-buffering of the resident operands.
        hy, cy = call(single_buffer_weights=False)

    if b_pad != B:
        hy = hy[:B]
        cy = cy[:B]
    return hy, (hy, cy)


def lstm_cell_ref(x, hx, cx, w_ih, b_ih, w_hh, b_hh):
    """Pure-JAX reference mirroring the PyTorch forward."""
    gates = x @ w_ih.T + b_ih + hx @ w_hh.T + b_hh
    i, f, g, o = jnp.split(gates, 4, axis=1)
    i = jax.nn.sigmoid(i)
    f = jax.nn.sigmoid(f)
    g = jnp.tanh(g)
    o = jax.nn.sigmoid(o)
    cy = f * cx + i * g
    hy = o * jnp.tanh(cy)
    return hy, (hy, cy)


if __name__ == "__main__":
    input_size = 16
    hidden_size = 32
    batch = 8
    dtype = jnp.float32

    key = jax.random.PRNGKey(0)
    kx, kh, kc, k1, k2, k3, k4 = jax.random.split(key, 7)

    # Deterministic "parameter init" following nn.Linear's U(-1/sqrt(fan_in), .)
    bound_ih = 1.0 / math.sqrt(input_size)
    bound_hh = 1.0 / math.sqrt(hidden_size)
    w_ih = jax.random.uniform(k1, (4 * hidden_size, input_size), dtype,
                              -bound_ih, bound_ih)
    b_ih = jax.random.uniform(k2, (4 * hidden_size,), dtype, -bound_ih, bound_ih)
    w_hh = jax.random.uniform(k3, (4 * hidden_size, hidden_size), dtype,
                              -bound_hh, bound_hh)
    b_hh = jax.random.uniform(k4, (4 * hidden_size,), dtype, -bound_hh, bound_hh)

    x = jax.random.normal(kx, (batch, input_size), dtype)
    hx = jax.random.normal(kh, (batch, hidden_size), dtype)
    cx = jax.random.normal(kc, (batch, hidden_size), dtype)

    hy_r, (_, cy_r) = lstm_cell_ref(x, hx, cx, w_ih, b_ih, w_hh, b_hh)

    # f32 matmul path: tight tolerance against the reference.
    w_ih_f32, w_hh_f32, bias_f32 = prepare_lstm_params(
        w_ih, b_ih, w_hh, b_hh, matmul_dtype=jnp.float32)
    hy, (hy2, cy) = lstm_cell(x, hx, cx, w_ih_f32, w_hh_f32, bias_f32)
    jax.block_until_ready((hy, hy2, cy))
    assert jnp.allclose(hy, hy_r, atol=1e-5, rtol=1e-5), "hy mismatch (f32)"
    assert jnp.allclose(cy, cy_r, atol=1e-5, rtol=1e-5), "cy mismatch (f32)"

    # bf16 matmul inputs (f32 accumulation; bf16 transcendentals only on chips
    # with a bf16 EUP path): looser tolerance.
    w_ih_bf, w_hh_bf, bias_bf = prepare_lstm_params(
        w_ih, b_ih, w_hh, b_hh, matmul_dtype=jnp.bfloat16)
    hy_b, (_, cy_b) = lstm_cell(x, hx, cx, w_ih_bf, w_hh_bf, bias_bf)
    jax.block_until_ready((hy_b, cy_b))
    assert jnp.allclose(hy_b, hy_r, atol=5e-2, rtol=5e-2), "hy mismatch (bf16)"
    assert jnp.allclose(cy_b, cy_r, atol=5e-2, rtol=5e-2), "cy mismatch (bf16)"

    print("KERNEL_OK")
</pallas_src>

<mosaic_0001>
module attributes {stable_mosaic.version = 11 : i64} {
  func.func @lstm_cell_kernel(%arg0: i32, %arg1: memref<8x16xf32, #tpu.memory_space<vmem>>, %arg2: memref<8x32xf32, #tpu.memory_space<vmem>>, %arg3: memref<8x32xf32, #tpu.memory_space<vmem>>, %arg4: memref<16x128xf32, #tpu.memory_space<vmem>>, %arg5: memref<32x128xf32, #tpu.memory_space<vmem>>, %arg6: memref<1x128xf32, #tpu.memory_space<vmem>>, %arg7: memref<8x32xf32, #tpu.memory_space<vmem>>, %arg8: memref<8x32xf32, #tpu.memory_space<vmem>>) attributes {dimension_semantics = [#tpu.dimension_semantics<parallel>], iteration_bounds = array<i64: 1>, scalar_prefetch = 0 : i64, scratch_operands = 0 : i64, tpu.core_type = #tpu.core_type<tc>, window_params = [{transform_indices = @transform_0, window_bounds = array<i64: 8, 16>}, {transform_indices = @transform_1, window_bounds = array<i64: 8, 32>}, {transform_indices = @transform_2, window_bounds = array<i64: 8, 32>}, {pipeline_mode = #tpu.pipeline_mode<synchronous>, transform_indices = @transform_3, window_bounds = array<i64: 16, 128>}, {pipeline_mode = #tpu.pipeline_mode<synchronous>, transform_indices = @transform_4, window_bounds = array<i64: 32, 128>}, {pipeline_mode = #tpu.pipeline_mode<synchronous>, transform_indices = @transform_5, window_bounds = array<i64: 1, 128>}, {transform_indices = @transform_6, window_bounds = array<i64: 8, 32>}, {transform_indices = @transform_7, window_bounds = array<i64: 8, 32>}]} {
    %c0 = arith.constant 0 : index
    %c0_0 = arith.constant 0 : index
    %0 = vector.load %arg1[%c0, %c0_0] : memref<8x16xf32, #tpu.memory_space<vmem>>, vector<8x16xf32>
    %c0_1 = arith.constant 0 : index
    %c0_2 = arith.constant 0 : index
    %1 = vector.load %arg4[%c0_1, %c0_2] : memref<16x128xf32, #tpu.memory_space<vmem>>, vector<16x128xf32>
    %cst = arith.constant dense<0.000000e+00> : vector<8x128xf32>
    %2 = tpu.matmul %0, %1, %cst {dimension_numbers = #tpu.dot_dimension_numbers<[1], [0], [0], [1], [0, 0, 1, 1], [], []>} : vector<8x16xf32>, vector<16x128xf32>, vector<8x128xf32> -> vector<8x128xf32>
    %c0_3 = arith.constant 0 : index
    %c0_4 = arith.constant 0 : index
    %3 = vector.load %arg2[%c0_3, %c0_4] : memref<8x32xf32, #tpu.memory_space<vmem>>, vector<8x32xf32>
    %c0_5 = arith.constant 0 : index
    %c0_6 = arith.constant 0 : index
    %4 = vector.load %arg5[%c0_5, %c0_6] : memref<32x128xf32, #tpu.memory_space<vmem>>, vector<32x128xf32>
    %cst_7 = arith.constant dense<0.000000e+00> : vector<8x128xf32>
    %5 = tpu.matmul %3, %4, %cst_7 {dimension_numbers = #tpu.dot_dimension_numbers<[1], [0], [0], [1], [0, 0, 1, 1], [], []>} : vector<8x32xf32>, vector<32x128xf32>, vector<8x128xf32> -> vector<8x128xf32>
    %6 = arith.addf %2, %5 : vector<8x128xf32>
    %c0_8 = arith.constant 0 : index
    %c0_9 = arith.constant 0 : index
    %7 = vector.load %arg6[%c0_8, %c0_9] : memref<1x128xf32, #tpu.memory_space<vmem>>, vector<1x128xf32>
    %8 = vector.broadcast %7 : vector<1x128xf32> to vector<8x128xf32>
    %9 = arith.addf %6, %8 : vector<8x128xf32>
    %10 = vector.extract_strided_slice %9 {offsets = [0, 0], sizes = [8, 96], strides = [1, 1]} : vector<8x128xf32> to vector<8x96xf32>
    %11 = arith.negf %10 : vector<8x96xf32>
    %12 = math.exp %11 : vector<8x96xf32>
    %cst_10 = arith.constant 1.000000e+00 : f32
    %13 = vector.broadcast %cst_10 : f32 to vector<8x96xf32>
    %14 = arith.addf %13, %12 : vector<8x96xf32>
    %15 = arith.divf %13, %14 : vector<8x96xf32>
    %16 = vector.extract_strided_slice %9 {offsets = [0, 96], sizes = [8, 32], strides = [1, 1]} : vector<8x128xf32> to vector<8x32xf32>
    %17 = math.tanh %16 : vector<8x32xf32>
    %18 = vector.extract_strided_slice %15 {offsets = [0, 0], sizes = [8, 32], strides = [1, 1]} : vector<8x96xf32> to vector<8x32xf32>
    %19 = vector.extract_strided_slice %15 {offsets = [0, 32], sizes = [8, 32], strides = [1, 1]} : vector<8x96xf32> to vector<8x32xf32>
    %20 = vector.extract_strided_slice %15 {offsets = [0, 64], sizes = [8, 32], strides = [1, 1]} : vector<8x96xf32> to vector<8x32xf32>
    %c0_11 = arith.constant 0 : index
    %c0_12 = arith.constant 0 : index
    %21 = vector.load %arg3[%c0_11, %c0_12] : memref<8x32xf32, #tpu.memory_space<vmem>>, vector<8x32xf32>
    %22 = arith.mulf %19, %21 : vector<8x32xf32>
    %23 = arith.mulf %18, %17 : vector<8x32xf32>
    %24 = arith.addf %22, %23 : vector<8x32xf32>
    %25 = math.tanh %24 : vector<8x32xf32>
    %26 = arith.mulf %20, %25 : vector<8x32xf32>
    %c0_13 = arith.constant 0 : index
    %c0_14 = arith.constant 0 : index
    %27 = vector.load %arg8[%c0_13, %c0_14] : memref<8x32xf32, #tpu.memory_space<vmem>>, vector<8x32xf32>
    tpu.vector_store %arg8[%c0_13, %c0_14], %24 {strides = array<i32>} : memref<8x32xf32, #tpu.memory_space<vmem>>, vector<8x32xf32>,
    %c0_15 = arith.constant 0 : index
    %c0_16 = arith.constant 0 : index
    %28 = vector.load %arg7[%c0_15, %c0_16] : memref<8x32xf32, #tpu.memory_space<vmem>>, vector<8x32xf32>
    tpu.vector_store %arg7[%c0_15, %c0_16], %26 {strides = array<i32>} : memref<8x32xf32, #tpu.memory_space<vmem>>, vector<8x32xf32>,
    return
  }
  func.func @transform_0(%arg0: i32) -> (i32, i32) {
    %c0_i32 = arith.constant 0 : i32
    %c0_i32_0 = arith.constant 0 : i32
    return %arg0, %c0_i32 : i32, i32
  }
  func.func @transform_1(%arg0: i32) -> (i32, i32) {
    %c0_i32 = arith.constant 0 : i32
    %c0_i32_0 = arith.constant 0 : i32
    return %arg0, %c0_i32 : i32, i32
  }
  func.func @transform_2(%arg0: i32) -> (i32, i32) {
    %c0_i32 = arith.constant 0 : i32
    %c0_i32_0 = arith.constant 0 : i32
    return %arg0, %c0_i32 : i32, i32
  }
  func.func @transform_3(%arg0: i32) -> (i32, i32) {
    %c0_i32 = arith.constant 0 : i32
    %c0_i32_0 = arith.constant 0 : i32
    %c0_i32_1 = arith.constant 0 : i32
    return %c0_i32, %c0_i32_0 : i32, i32
  }
  func.func @transform_4(%arg0: i32) -> (i32, i32) {
    %c0_i32 = arith.constant 0 : i32
    %c0_i32_0 = arith.constant 0 : i32
    %c0_i32_1 = arith.constant 0 : i32
    return %c0_i32, %c0_i32_0 : i32, i32
  }
  func.func @transform_5(%arg0: i32) -> (i32, i32) {
    %c0_i32 = arith.constant 0 : i32
    %c0_i32_0 = arith.constant 0 : i32
    %c0_i32_1 = arith.constant 0 : i32
    return %c0_i32, %c0_i32_0 : i32, i32
  }
  func.func @transform_6(%arg0: i32) -> (i32, i32) {
    %c0_i32 = arith.constant 0 : i32
    %c0_i32_0 = arith.constant 0 : i32
    return %arg0, %c0_i32 : i32, i32
  }
  func.func @transform_7(%arg0: i32) -> (i32, i32) {
    %c0_i32 = arith.constant 0 : i32
    %c0_i32_0 = arith.constant 0 : i32
    return %arg0, %c0_i32 : i32, i32
  }
}

module attributes {stable_mosaic.version = 11 : i64} {
  func.func @lstm_cell_kernel(%arg0: i32, %arg1: memref<8x16xf32, #tpu.memory_space<vmem>>, %arg2: memref<8x32xf32, #tpu.memory_space<vmem>>, %arg3: memref<8x32xf32, #tpu.memory_space<vmem>>, %arg4: memref<16x128xf32, #tpu.memory_space<vmem>>, %arg5: memref<32x128xf32, #tpu.memory_space<vmem>>, %arg6: memref<1x128xf32, #tpu.memory_space<vmem>>, %arg7: memref<8x32xf32, #tpu.memory_space<vmem>>, %arg8: memref<8x32xf32, #tpu.memory_space<vmem>>) attributes {dimension_semantics = [#tpu.dimension_semantics<parallel>], iteration_bounds = array<i64: 1>, scalar_prefetch = 0 : i64, scratch_operands = 0 : i64, tpu.core_type = #tpu.core_type<tc>, window_params = [{transform_indices = @transform_0, window_bounds = array<i64: 8, 16>}, {transform_indices = @transform_1, window_bounds = array<i64: 8, 32>}, {transform_indices = @transform_2, window_bounds = array<i64: 8, 32>}, {pipeline_mode = #tpu.pipeline_mode<synchronous>, transform_indices = @transform_3, window_bounds = array<i64: 16, 128>}, {pipeline_mode = #tpu.pipeline_mode<synchronous>, transform_indices = @transform_4, window_bounds = array<i64: 32, 128>}, {pipeline_mode = #tpu.pipeline_mode<synchronous>, transform_indices = @transform_5, window_bounds = array<i64: 1, 128>}, {transform_indices = @transform_6, window_bounds = array<i64: 8, 32>}, {transform_indices = @transform_7, window_bounds = array<i64: 8, 32>}]} {
    %c0 = arith.constant 0 : index
    %c0_0 = arith.constant 0 : index
    %0 = vector.load %arg1[%c0, %c0_0] : memref<8x16xf32, #tpu.memory_space<vmem>>, vector<8x16xf32>
    %c0_1 = arith.constant 0 : index
    %c0_2 = arith.constant 0 : index
    %1 = vector.load %arg4[%c0_1, %c0_2] : memref<16x128xf32, #tpu.memory_space<vmem>>, vector<16x128xf32>
    %cst = arith.constant dense<0.000000e+00> : vector<8x128xf32>
    %2 = tpu.matmul %0, %1, %cst {dimension_numbers = #tpu.dot_dimension_numbers<[1], [0], [0], [1], [0, 0, 1, 1], [], []>} : vector<8x16xf32>, vector<16x128xf32>, vector<8x128xf32> -> vector<8x128xf32>
    %c0_3 = arith.constant 0 : index
    %c0_4 = arith.constant 0 : index
    %3 = vector.load %arg2[%c0_3, %c0_4] : memref<8x32xf32, #tpu.memory_space<vmem>>, vector<8x32xf32>
    %c0_5 = arith.constant 0 : index
    %c0_6 = arith.constant 0 : index
    %4 = vector.load %arg5[%c0_5, %c0_6] : memref<32x128xf32, #tpu.memory_space<vmem>>, vector<32x128xf32>
    %cst_7 = arith.constant dense<0.000000e+00> : vector<8x128xf32>
    %5 = tpu.matmul %3, %4, %cst_7 {dimension_numbers = #tpu.dot_dimension_numbers<[1], [0], [0], [1], [0, 0, 1, 1], [], []>} : vector<8x32xf32>, vector<32x128xf32>, vector<8x128xf32> -> vector<8x128xf32>
    %6 = arith.addf %2, %5 : vector<8x128xf32>
    %c0_8 = arith.constant 0 : index
    %c0_9 = arith.constant 0 : index
    %7 = vector.load %arg6[%c0_8, %c0_9] : memref<1x128xf32, #tpu.memory_space<vmem>>, vector<1x128xf32>
    %8 = vector.broadcast %7 : vector<1x128xf32> to vector<8x128xf32>
    %9 = arith.addf %6, %8 : vector<8x128xf32>
    %10 = vector.extract_strided_slice %9 {offsets = [0, 0], sizes = [8, 96], strides = [1, 1]} : vector<8x128xf32> to vector<8x96xf32>
    %11 = arith.negf %10 : vector<8x96xf32>
    %12 = math.exp %11 : vector<8x96xf32>
    %cst_10 = arith.constant 1.000000e+00 : f32
    %13 = vector.broadcast %cst_10 : f32 to vector<8x96xf32>
    %14 = arith.addf %13, %12 : vector<8x96xf32>
    %15 = arith.divf %13, %14 : vector<8x96xf32>
    %16 = vector.extract_strided_slice %9 {offsets = [0, 96], sizes = [8, 32], strides = [1, 1]} : vector<8x128xf32> to vector<8x32xf32>
    %17 = math.tanh %16 : vector<8x32xf32>
    %18 = vector.extract_strided_slice %15 {offsets = [0, 0], sizes = [8, 32], strides = [1, 1]} : vector<8x96xf32> to vector<8x32xf32>
    %19 = vector.extract_strided_slice %15 {offsets = [0, 32], sizes = [8, 32], strides = [1, 1]} : vector<8x96xf32> to vector<8x32xf32>
    %20 = vector.extract_strided_slice %15 {offsets = [0, 64], sizes = [8, 32], strides = [1, 1]} : vector<8x96xf32> to vector<8x32xf32>
    %c0_11 = arith.constant 0 : index
    %c0_12 = arith.constant 0 : index
    %21 = vector.load %arg3[%c0_11, %c0_12] : memref<8x32xf32, #tpu.memory_space<vmem>>, vector<8x32xf32>
    %22 = arith.mulf %19, %21 : vector<8x32xf32>
    %23 = arith.mulf %18, %17 : vector<8x32xf32>
    %24 = arith.addf %22, %23 : vector<8x32xf32>
    %25 = math.tanh %24 : vector<8x32xf32>
    %26 = arith.mulf %20, %25 : vector<8x32xf32>
    %c0_13 = arith.constant 0 : index
    %c0_14 = arith.constant 0 : index
    %27 = vector.load %arg8[%c0_13, %c0_14] : memref<8x32xf32, #tpu.memory_space<vmem>>, vector<8x32xf32>
    tpu.vector_store %arg8[%c0_13, %c0_14], %24 {strides = array<i32>} : memref<8x32xf32, #tpu.memory_space<vmem>>, vector<8x32xf32>,
    %c0_15 = arith.constant 0 : index
    %c0_16 = arith.constant 0 : index
    %28 = vector.load %arg7[%c0_15, %c0_16] : memref<8x32xf32, #tpu.memory_space<vmem>>, vector<8x32xf32>
    tpu.vector_store %arg7[%c0_15, %c0_16], %26 {strides = array<i32>} : memref<8x32xf32, #tpu.memory_space<vmem>>, vector<8x32xf32>,
    return
  }
  func.func @transform_0(%arg0: i32) -> (i32, i32) {
    %c0_i32 = arith.constant 0 : i32
    %c0_i32_0 = arith.constant 0 : i32
    return %arg0, %c0_i32 : i32, i32
  }
  func.func @transform_1(%arg0: i32) -> (i32, i32) {
    %c0_i32 = arith.constant 0 : i32
    %c0_i32_0 = arith.constant 0 : i32
    return %arg0, %c0_i32 : i32, i32
  }
  func.func @transform_2(%arg0: i32) -> (i32, i32) {
    %c0_i32 = arith.constant 0 : i32
    %c0_i32_0 = arith.constant 0 : i32
    return %arg0, %c0_i32 : i32, i32
  }
  func.func @transform_3(%arg0: i32) -> (i32, i32) {
    %c0_i32 = arith.constant 0 : i32
    %c0_i32_0 = arith.constant 0 : i32
    %c0_i32_1 = arith.constant 0 : i32
    return %c0_i32, %c0_i32_0 : i32, i32
  }
  func.func @transform_4(%arg0: i32) -> (i32, i32) {
    %c0_i32 = arith.constant 0 : i32
    %c0_i32_0 = arith.constant 0 : i32
    %c0_i32_1 = arith.constant 0 : i32
    return %c0_i32, %c0_i32_0 : i32, i32
  }
  func.func @transform_5(%arg0: i32) -> (i32, i32) {
    %c0_i32 = arith.constant 0 : i32
    %c0_i32_0 = arith.constant 0 : i32
    %c0_i32_1 = arith.constant 0 : i32
    return %c0_i32, %c0_i32_0 : i32, i32
  }
  func.func @transform_6(%arg0: i32) -> (i32, i32) {
    %c0_i32 = arith.constant 0 : i32
    %c0_i32_0 = arith.constant 0 : i32
    return %arg0, %c0_i32 : i32, i32
  }
  func.func @transform_7(%arg0: i32) -> (i32, i32) {
    %c0_i32 = arith.constant 0 : i32
    %c0_i32_0 = arith.constant 0 : i32
    return %arg0, %c0_i32 : i32, i32
  }
}

</mosaic_0001>

<llo_original>
// kernel: tpu_custom_call.1
$region0: #{tpu_custom_call.1}
  #allocation0 [shape = 'u32[]', space=smem, size = 0x4, offset = 0x4, fixed_abs, tag = 'smem constant byte address 0x4 - core index']
  #allocation1 [shape = 'u32[144,128]{1,0:T(1,128)}', space=vmem, size = 0x12000, scoped, tag = 'internal scratch']
  %s0 = inlined_call_operand.hbm [shape: f32[8,16], index: 0, kind: input, shape index: {}]
  %s1 = inlined_call_operand.hbm [shape: f32[8,32], index: 1, kind: input, shape index: {}]
  %s2 = inlined_call_operand.hbm [shape: f32[8,32], index: 2, kind: input, shape index: {}]
  %s3 = inlined_call_operand.hbm [shape: f32[16,128], index: 3, kind: input, shape index: {}]
  %s4 = inlined_call_operand.hbm [shape: f32[32,128], index: 4, kind: input, shape index: {}]
  %s5 = inlined_call_operand.vmem [shape: f32[1,128], index: 5, kind: input, shape index: {}]
  %s6 = inlined_call_operand.hbm [shape: f32[8,32], index: 6, kind: output, shape index: {0}]
  %s7 = inlined_call_operand.hbm [shape: f32[8,32], index: 7, kind: output, shape index: {1}]
  %8 = xla_tuple %s6, %s7
  %s9 = sld [smem:[#allocation0]]
  $region62: #{tpu_custom_call.1} parent=0
    _
  %s11 = ssub.s32 1, %s9
  %s12 = scalar_select 0, %s11, %s9
  $region1: #{tpu_custom_call.1} parent=0
    #allocation2 [shape = 'u8[4096]{0}', space=vmem, size = 0x1000, scoped, tag = 'input window, operand 0, single buffered']
    #allocation3 [shape = 's32[1]{0}', space=sflag, size = 0x4, scoped, tag = 'scoped memory for tpu_custom_call.1']
    #allocation4 [shape = 's32[1]{0}', space=sflag, size = 0x4, scoped, tag = 'scoped memory for tpu_custom_call.1']
    #allocation5 [shape = 'u8[4096]{0}', space=vmem, size = 0x1000, scoped, tag = 'input window, operand 1, single buffered']
    #allocation6 [shape = 's32[1]{0}', space=sflag, size = 0x4, scoped, tag = 'scoped memory for tpu_custom_call.1']
    #allocation7 [shape = 'u8[4096]{0}', space=vmem, size = 0x1000, scoped, tag = 'input window, operand 2, single buffered']
    #allocation8 [shape = 'u8[8192]{0}', space=vmem, size = 0x2000, scoped, tag = 'input window, operand 3, single buffered']
    #allocation9 [shape = 's32[1]{0}', space=sflag, size = 0x4, scoped, tag = 'scoped memory for tpu_custom_call.1']
    #allocation10 [shape = 'u8[16384]{0}', space=vmem, size = 0x4000, scoped, tag = 'input window, operand 4, single buffered']
    #allocation11 [shape = 'u8[4096]{0}', space=vmem, size = 0x1000, scoped, tag = 'output window, operand 0, single buffered']
    #allocation12 [shape = 'u8[4096]{0}', space=vmem, size = 0x1000, scoped, tag = 'output window, operand 1, single buffered']
    #allocation13 [shape = 's32[1]{0}', space=sflag, size = 0x4, scoped, tag = 'scoped memory for tpu_custom_call.1']
    %13 = vsyncpa [#allocation3], 0
    %14 = vsyncpa [#allocation6], 0
    %15 = vsyncpa [#allocation9], 0
    %16 = vsyncpa [#allocation4], 0
    %17 = vsyncpa [#allocation13], 0
    // Predicated region
    $region2: #{tpu_custom_call.1} parent=1 // pred_check
      _
    $region3: #{tpu_custom_call.1} parent=1 // pred_check_branch
      %19 = sbr.rel (0) target = $region5
    $region4: #{tpu_custom_call.1} parent=1 // pred_region
      %s21 = ssub.s32 128, 128
      %22 = vsyncadd [#allocation3], %s21
      %s24 = sshll.u32 [#allocation2], 4
      %s25 = int_to_ptr.vmem [resolvable:$true] %s24
      %27 = dma.hbm_to_vmem [thread:$0]  %s0, 128, %s25, [#allocation3]
    $region5: #{tpu_custom_call.1} parent=1 // pred_fallthru
      _
    // Predicated region
    $region6: #{tpu_custom_call.1} parent=1 // pred_check
      _
    $region7: #{tpu_custom_call.1} parent=1 // pred_check_branch
      %29 = sbr.rel (0) target = $region9
    $region8: #{tpu_custom_call.1} parent=1 // pred_region
      %s31 = ssub.s32 128, 128
      %32 = vsyncadd [#allocation6], %s31
      %s34 = sshll.u32 [#allocation5], 4
      %s35 = int_to_ptr.vmem [resolvable:$true] %s34
      %37 = dma.hbm_to_vmem [thread:$0]  %s1, 128, %s35, [#allocation6]
    $region9: #{tpu_custom_call.1} parent=1 // pred_fallthru
      _
    // Predicated region
    $region10: #{tpu_custom_call.1} parent=1 // pred_check
      _
    $region11: #{tpu_custom_call.1} parent=1 // pred_check_branch
      %39 = sbr.rel (0) target = $region13
    $region12: #{tpu_custom_call.1} parent=1 // pred_region
      %s41 = ssub.s32 128, 128
      %42 = vsyncadd [#allocation6], %s41
      %s44 = sshll.u32 [#allocation7], 4
      %s45 = int_to_ptr.vmem [resolvable:$true] %s44
      %47 = dma.hbm_to_vmem [thread:$0]  %s2, 128, %s45, [#allocation6]
    $region13: #{tpu_custom_call.1} parent=1 // pred_fallthru
      _
    // Predicated region
    $region14: #{tpu_custom_call.1} parent=1 // pred_check
      _
    $region15: #{tpu_custom_call.1} parent=1 // pred_check_branch
      %49 = sbr.rel (0) target = $region17
    $region16: #{tpu_custom_call.1} parent=1 // pred_region
      %s51 = ssub.s32 256, 256
      %52 = vsyncadd [#allocation9], %s51
      %s53 = sshll.u32 [#allocation8], 4
      %s54 = int_to_ptr.vmem [resolvable:$true] %s53
      %59 = dma.hbm_to_vmem [thread:$0]  %s3, 256, %s54, [#allocation9], 128, 128, 8
    $region17: #{tpu_custom_call.1} parent=1 // pred_fallthru
      _
    // Predicated region
    $region18: #{tpu_custom_call.1} parent=1 // pred_check
      _
    $region19: #{tpu_custom_call.1} parent=1 // pred_check_branch
      %61 = sbr.rel (0) target = $region21
    $region20: #{tpu_custom_call.1} parent=1 // pred_region
      %s63 = ssub.s32 512, 512
      %64 = vsyncadd [#allocation9], %s63
      %s65 = sshll.u32 [#allocation10], 4
      %s66 = int_to_ptr.vmem [resolvable:$true] %s65
      %71 = dma.hbm_to_vmem [thread:$0]  %s4, 512, %s66, [#allocation9], 128, 128, 8
    $region21: #{tpu_custom_call.1} parent=1 // pred_fallthru
      _
    // Predicated region
    $region22: #{tpu_custom_call.1} parent=1 // pred_check
      _
    $region23: #{tpu_custom_call.1} parent=1 // pred_check_branch
      %73 = sbr.rel (0) target = $region25
    $region24: #{tpu_custom_call.1} parent=1 // pred_region
      _
    $region25: #{tpu_custom_call.1} parent=1 // pred_fallthru
      _
    // Predicated region
    $region26: #{tpu_custom_call.1} parent=1 // pred_check
      _
    $region27: #{tpu_custom_call.1} parent=1 // pred_check_branch
      %75 = sbr.rel (0) target = $region29
    $region28: #{tpu_custom_call.1} parent=1 // pred_region
      %76 = dma.done [#allocation3], 128
    $region29: #{tpu_custom_call.1} parent=1 // pred_fallthru
      _
    // Predicated region
    $region30: #{tpu_custom_call.1} parent=1 // pred_check
      _
    $region31: #{tpu_custom_call.1} parent=1 // pred_check_branch
      %78 = sbr.rel (0) target = $region33
    $region32: #{tpu_custom_call.1} parent=1 // pred_region
      %79 = dma.done [#allocation6], 128
    $region33: #{tpu_custom_call.1} parent=1 // pred_fallthru
      _
    // Predicated region
    $region34: #{tpu_custom_call.1} parent=1 // pred_check
      _
    $region35: #{tpu_custom_call.1} parent=1 // pred_check_branch
      %81 = sbr.rel (0) target = $region37
    $region36: #{tpu_custom_call.1} parent=1 // pred_region
      %82 = dma.done [#allocation6], 128
    $region37: #{tpu_custom_call.1} parent=1 // pred_fallthru
      _
    // Predicated region
    $region38: #{tpu_custom_call.1} parent=1 // pred_check
      _
    $region39: #{tpu_custom_call.1} parent=1 // pred_check_branch
      %84 = sbr.rel (0) target = $region41
    $region40: #{tpu_custom_call.1} parent=1 // pred_region
      %85 = dma.done [#allocation9], 256
    $region41: #{tpu_custom_call.1} parent=1 // pred_fallthru
      _
    // Predicated region
    $region42: #{tpu_custom_call.1} parent=1 // pred_check
      _
    $region43: #{tpu_custom_call.1} parent=1 // pred_check_branch
      %87 = sbr.rel (0) target = $region45
    $region44: #{tpu_custom_call.1} parent=1 // pred_region
      %88 = dma.done [#allocation9], 512
    $region45: #{tpu_custom_call.1} parent=1 // pred_fallthru
      _
    %v89 = vld [vmem:[#allocation2] sm:$0xff]
    %v90 = vld [vmem:[#allocation8] sm:$0xff]
    %v91 = vld [vmem:[#allocation8 + $0x8] sm:$0xff]
    %v92 = vld [vmem:[#allocation5] sm:$0xff]
    %v93 = vld [vmem:[#allocation10] sm:$0xff]
    %v94 = vld [vmem:[#allocation10 + $0x8] sm:$0xff]
    %v95 = vld [vmem:[#allocation10 + $0x10] sm:$0xff]
    %v96 = vld [vmem:[#allocation10 + $0x18] sm:$0xff]
    %vm97 = vcmask 261120
    %v99 = vsel %vm97, %v92, 0
    %101 = vmatprep.subr.mxu0 0.0
    %102 = vmatpush1.msra.mxu0 %v93
    %103 = vmatprep.subr.mxu0 0.0
    %104 = vmatpush1.msra.mxu0 %v94
    %105 = vmatprep.subr.mxu0 0.0
    %106 = vmatpush1.msra.mxu0 %v95
    %107 = vmatprep.subr.mxu0 0.0
    %108 = vmatpush1.msra.mxu0 %v96
    %109 = vmatprep.subr.mxu0 0.0
    %110 = vmatpush1.msra.mxu0 0.0
    %111 = vmatprep.subr.mxu0 0.0
    %112 = vmatpush1.msra.mxu0 0.0
    %113 = vmatprep.subr.mxu0 0.0
    %114 = vmatpush1.msra.mxu0 0.0
    %115 = vmatprep.subr.mxu0 0.0
    %116 = vmatpush1.msra.mxu0 0.0
    %117 = vmatprep.subr.mxu0 0.0
    %118 = vmatpush1.msra.mxu0 0.0
    %119 = vmatprep.subr.mxu0 0.0
    %120 = vmatpush1.msra.mxu0 0.0
    %121 = vmatprep.subr.mxu0 0.0
    %122 = vmatpush1.msra.mxu0 0.0
    %123 = vmatprep.subr.mxu0 0.0
    %124 = vmatpush1.msra.mxu0 0.0
    %125 = vmatprep.subr.mxu0 0.0
    %126 = vmatpush1.msra.mxu0 0.0
    %127 = vmatprep.subr.mxu0 0.0
    %128 = vmatpush1.msra.mxu0 0.0
    %129 = vmatprep.subr.mxu0 0.0
    %130 = vmatpush1.msra.mxu0 0.0
    %131 = vmatprep.subr.mxu0 0.0
    %132 = vmatpush1.msra.mxu0 0.0
    %133 = vmatprep.subr.mxu0 0.0
    %134 = vmatpush1.msra.mxu0 0.0
    %135 = vmatprep.subr.mxu0 0.0
    %136 = vmatpush1.msra.mxu0 0.0
    %137 = vmatprep.subr.mxu0 0.0
    %138 = vmatpush1.msra.mxu0 0.0
    %139 = vmatprep.subr.mxu0 0.0
    %140 = vmatpush1.msra.mxu0 0.0
    %141 = vmatprep.subr.mxu0 0.0
    %142 = vmatpush1.msra.mxu0 0.0
    %143 = vmatprep.subr.mxu0 0.0
    %144 = vmatpush1.msra.mxu0 0.0
    %145 = vmatprep.subr.mxu0 0.0
    %146 = vmatpush1.msra.mxu0 0.0
    %147 = vmatprep.subr.mxu0 0.0
    %148 = vmatpush1.msra.mxu0 0.0
    %149 = vmatprep.subr.mxu0 0.0
    %150 = vmatpush1.msra.mxu0 0.0
    %151 = vmatprep.subr.mxu0 0.0
    %152 = vmatpush1.msra.mxu0 0.0
    %153 = vmatprep.subr.mxu0 0.0
    %154 = vmatpush1.msra.mxu0 0.0
    %155 = vmatprep.subr.mxu0 0.0
    %156 = vmatpush1.msra.mxu0 0.0
    %157 = vmatprep.subr.mxu0 0.0
    %158 = vmatpush1.msra.mxu0 0.0
    %159 = vmatprep.subr.mxu0 0.0
    %160 = vmatpush1.msra.mxu0 0.0
    %161 = vmatprep.subr.mxu0 0.0
    %162 = vmatpush1.msra.mxu0 0.0
    %163 = vmatprep.subr.mxu0 0.0
    %164 = vmatpush1.msra.mxu0 0.0
    %165 = vmatprep.mubr.f32.mxu0 0.0
    %166 = vmatmul.mubr.f32.gmra.mrb[0].mxu0 %v99
    %v167 = vpop.f32.mrb[0].mxu0
    %v168 = vadd.f32 0.0, %v167
    %v169 = vpop.f32.mrb[0].mxu0
    %170 = vdwg.mxu0
    %vm171 = vcmask 130048
    %v173 = vsel %vm171, %v89, 0
    %175 = vmatprep.subr.mxu0 0.0
    %176 = vmatpush1.msra.mxu0 %v90
    %177 = vmatprep.subr.mxu0 0.0
    %178 = vmatpush1.msra.mxu0 %v91
    %179 = vmatprep.subr.mxu0 0.0
    %180 = vmatpush1.msra.mxu0 0.0
    %181 = vmatprep.subr.mxu0 0.0
    %182 = vmatpush1.msra.mxu0 0.0
    %183 = vmatprep.subr.mxu0 0.0
    %184 = vmatpush1.msra.mxu0 0.0
    %185 = vmatprep.subr.mxu0 0.0
    %186 = vmatpush1.msra.mxu0 0.0
    %187 = vmatprep.subr.mxu0 0.0
    %188 = vmatpush1.msra.mxu0 0.0
    %189 = vmatprep.subr.mxu0 0.0
    %190 = vmatpush1.msra.mxu0 0.0
    %191 = vmatprep.subr.mxu0 0.0
    %192 = vmatpush1.msra.mxu0 0.0
    %193 = vmatprep.subr.mxu0 0.0
    %194 = vmatpush1.msra.mxu0 0.0
    %195 = vmatprep.subr.mxu0 0.0
    %196 = vmatpush1.msra.mxu0 0.0
    %197 = vmatprep.subr.mxu0 0.0
    %198 = vmatpush1.msra.mxu0 0.0
    %199 = vmatprep.subr.mxu0 0.0
    %200 = vmatpush1.msra.mxu0 0.0
    %201 = vmatprep.subr.mxu0 0.0
    %202 = vmatpush1.msra.mxu0 0.0
    %203 = vmatprep.subr.mxu0 0.0
    %204 = vmatpush1.msra.mxu0 0.0
    %205 = vmatprep.subr.mxu0 0.0
    %206 = vmatpush1.msra.mxu0 0.0
    %207 = vmatprep.subr.mxu0 0.0
    %208 = vmatpush1.msra.mxu0 0.0
    %209 = vmatprep.subr.mxu0 0.0
    %210 = vmatpush1.msra.mxu0 0.0
    %211 = vmatprep.subr.mxu0 0.0
    %212 = vmatpush1.msra.mxu0 0.0
    %213 = vmatprep.subr.mxu0 0.0
    %214 = vmatpush1.msra.mxu0 0.0
    %215 = vmatprep.subr.mxu0 0.0
    %216 = vmatpush1.msra.mxu0 0.0
    %217 = vmatprep.subr.mxu0 0.0
    %218 = vmatpush1.msra.mxu0 0.0
    %219 = vmatprep.subr.mxu0 0.0
    %220 = vmatpush1.msra.mxu0 0.0
    %221 = vmatprep.subr.mxu0 0.0
    %222 = vmatpush1.msra.mxu0 0.0
    %223 = vmatprep.subr.mxu0 0.0
    %224 = vmatpush1.msra.mxu0 0.0
    %225 = vmatprep.subr.mxu0 0.0
    %226 = vmatpush1.msra.mxu0 0.0
    %227 = vmatprep.subr.mxu0 0.0
    %228 = vmatpush1.msra.mxu0 0.0
    %229 = vmatprep.subr.mxu0 0.0
    %230 = vmatpush1.msra.mxu0 0.0
    %231 = vmatprep.subr.mxu0 0.0
    %232 = vmatpush1.msra.mxu0 0.0
    %233 = vmatprep.subr.mxu0 0.0
    %234 = vmatpush1.msra.mxu0 0.0
    %235 = vmatprep.subr.mxu0 0.0
    %236 = vmatpush1.msra.mxu0 0.0
    %237 = vmatprep.subr.mxu0 0.0
    %238 = vmatpush1.msra.mxu0 0.0
    %239 = vmatprep.mubr.f32.mxu0 0.0
    %240 = vmatmul.mubr.f32.gmra.mrb[0].mxu0 %v173
    %v241 = vpop.f32.mrb[0].mxu0
    %v242 = vadd.f32 %v168, %v241
    %v243 = vpop.f32.mrb[0].mxu0
    %244 = vdwg.mxu0
    %v245 = vld [vmem:[%s5] sm:$0x1]
    %v247 = vlaneseq
    %v248 = vshrl.u32 %v247, 7
    %v249 = vsub.s32 0, %v248
    %v250 = vrot.slane %v245, %v249
    %v252 = vadd.f32 %v242, %v250
    %v253 = vxor.u32 %v252, 2147483648
    %v254 = vmul.f32 %v253, 1.442695
    %v255 = vpow.pop %v254
    %v256 = vadd.f32 %v255, 1.0
    %v257 = vrcp.pop %v256
    %v258 = vmul.f32 1.0, %v257
    %v259 = vtanh.pop %v252
    %v260 = vld [vmem:[#allocation7] sm:$0xff]
    %262 = vrot.lane.b32.xlu0 %v260, 32
    %v263 = vpop.permute.xlu0 %262
    %v265 = vmul.f32 %v258, %v263
    %267 = vrot.lane.b32.xlu0 %v259, 32
    %v268 = vpop.permute.xlu0 %267
    %v270 = vmul.f32 %v258, %v268
    %272 = vrot.lane.b32.xlu0 %v270, 32
    %v273 = vpop.permute.xlu0 %272
    %v275 = vadd.f32 %v265, %v273
    %v276 = vtanh.pop %v275
    %278 = vrot.lane.b32.xlu0 %v276, 32
    %v279 = vpop.permute.xlu0 %278
    %v281 = vmul.f32 %v258, %v279
    %283 = vrot.lane.b32.xlu0 %v275, 96
    %v284 = vpop.permute.xlu0 %283
    %286 = vst.msk [vmem:[#allocation12] sm:$0xff] %vm97, %v284
    %288 = vrot.lane.b32.xlu0 %v281, 64
    %v289 = vpop.permute.xlu0 %288
    %291 = vst.msk [vmem:[#allocation11] sm:$0xff] %vm97, %v289
    // Predicated region
    $region46: #{tpu_custom_call.1} parent=1 // pred_check
      _
    $region47: #{tpu_custom_call.1} parent=1 // pred_check_branch
      %293 = sbr.rel (0) target = $region49
    $region48: #{tpu_custom_call.1} parent=1 // pred_region
      %s295 = ssub.s32 128, 128
      %296 = vsyncadd [#allocation4], %s295
      %s298 = sshll.u32 [#allocation11], 4
      %s299 = int_to_ptr.vmem [resolvable:$true] %s298
      %301 = dma.vmem_to_hbm [thread:$0]  %s299, 128, %s6, [#allocation4]
    $region49: #{tpu_custom_call.1} parent=1 // pred_fallthru
      _
    // Predicated region
    $region50: #{tpu_custom_call.1} parent=1 // pred_check
      _
    $region51: #{tpu_custom_call.1} parent=1 // pred_check_branch
      %303 = sbr.rel (0) target = $region53
    $region52: #{tpu_custom_call.1} parent=1 // pred_region
      %s305 = ssub.s32 128, 128
      %306 = vsyncadd [#allocation13], %s305
      %s308 = sshll.u32 [#allocation12], 4
      %s309 = int_to_ptr.vmem [resolvable:$true] %s308
      %311 = dma.vmem_to_hbm [thread:$0]  %s309, 128, %s7, [#allocation13]
    $region53: #{tpu_custom_call.1} parent=1 // pred_fallthru
      _
    // Predicated region
    $region54: #{tpu_custom_call.1} parent=1 // pred_check
      _
    $region55: #{tpu_custom_call.1} parent=1 // pred_check_branch
      %313 = sbr.rel (0) target = $region57
    $region56: #{tpu_custom_call.1} parent=1 // pred_region
      %314 = dma.done [#allocation4], 128
    $region57: #{tpu_custom_call.1} parent=1 // pred_fallthru
      _
    // Predicated region
    $region58: #{tpu_custom_call.1} parent=1 // pred_check
      _
    $region59: #{tpu_custom_call.1} parent=1 // pred_check_branch
      %316 = sbr.rel (0) target = $region61
    $region60: #{tpu_custom_call.1} parent=1 // pred_region
      %317 = dma.done [#allocation13], 128
    $region61: #{tpu_custom_call.1} parent=1 // pred_fallthru
      _
    %318 = vsyncpa [#allocation3], 1
    %319 = vsyncpa [#allocation6], 1
    %320 = vsyncpa [#allocation9], 1
    %321 = vsyncpa [#allocation4], 1
    %322 = vsyncpa [#allocation13], 1

// kernel: tpu_custom_call.1
$region0: #{tpu_custom_call.1}
  #allocation0 [shape = 'u32[]', space=smem, size = 0x4, offset = 0x4, fixed_abs, tag = 'smem constant byte address 0x4 - core index']
  #allocation1 [shape = 'u32[144,128]{1,0:T(1,128)}', space=vmem, size = 0x12000, scoped, tag = 'internal scratch']
  %s0 = inlined_call_operand.hbm [shape: f32[8,16], index: 0, kind: input, shape index: {}]
  %s1 = inlined_call_operand.hbm [shape: f32[8,32], index: 1, kind: input, shape index: {}]
  %s2 = inlined_call_operand.hbm [shape: f32[8,32], index: 2, kind: input, shape index: {}]
  %s3 = inlined_call_operand.hbm [shape: f32[16,128], index: 3, kind: input, shape index: {}]
  %s4 = inlined_call_operand.hbm [shape: f32[32,128], index: 4, kind: input, shape index: {}]
  %s5 = inlined_call_operand.vmem [shape: f32[1,128], index: 5, kind: input, shape index: {}]
  %s6 = inlined_call_operand.hbm [shape: f32[8,32], index: 6, kind: output, shape index: {0}]
  %s7 = inlined_call_operand.hbm [shape: f32[8,32], index: 7, kind: output, shape index: {1}]
  %8 = xla_tuple %s6, %s7
  %s9 = sld [smem:[#allocation0]]
  $region62: #{tpu_custom_call.1} parent=0
    _
  %s11 = ssub.s32 1, %s9
  %s12 = scalar_select 0, %s11, %s9
  $region1: #{tpu_custom_call.1} parent=0
    #allocation2 [shape = 'u8[4096]{0}', space=vmem, size = 0x1000, scoped, tag = 'input window, operand 0, single buffered']
    #allocation3 [shape = 's32[1]{0}', space=sflag, size = 0x4, scoped, tag = 'scoped memory for tpu_custom_call.1']
    #allocation4 [shape = 's32[1]{0}', space=sflag, size = 0x4, scoped, tag = 'scoped memory for tpu_custom_call.1']
    #allocation5 [shape = 'u8[4096]{0}', space=vmem, size = 0x1000, scoped, tag = 'input window, operand 1, single buffered']
    #allocation6 [shape = 's32[1]{0}', space=sflag, size = 0x4, scoped, tag = 'scoped memory for tpu_custom_call.1']
    #allocation7 [shape = 'u8[4096]{0}', space=vmem, size = 0x1000, scoped, tag = 'input window, operand 2, single buffered']
    #allocation8 [shape = 'u8[8192]{0}', space=vmem, size = 0x2000, scoped, tag = 'input window, operand 3, single buffered']
    #allocation9 [shape = 's32[1]{0}', space=sflag, size = 0x4, scoped, tag = 'scoped memory for tpu_custom_call.1']
    #allocation10 [shape = 'u8[16384]{0}', space=vmem, size = 0x4000, scoped, tag = 'input window, operand 4, single buffered']
    #allocation11 [shape = 'u8[4096]{0}', space=vmem, size = 0x1000, scoped, tag = 'output window, operand 0, single buffered']
    #allocation12 [shape = 'u8[4096]{0}', space=vmem, size = 0x1000, scoped, tag = 'output window, operand 1, single buffered']
    #allocation13 [shape = 's32[1]{0}', space=sflag, size = 0x4, scoped, tag = 'scoped memory for tpu_custom_call.1']
    %13 = vsyncpa [#allocation3], 0
    %14 = vsyncpa [#allocation6], 0
    %15 = vsyncpa [#allocation9], 0
    %16 = vsyncpa [#allocation4], 0
    %17 = vsyncpa [#allocation13], 0
    // Predicated region
    $region2: #{tpu_custom_call.1} parent=1 // pred_check
      _
    $region3: #{tpu_custom_call.1} parent=1 // pred_check_branch
      %19 = sbr.rel (0) target = $region5
    $region4: #{tpu_custom_call.1} parent=1 // pred_region
      %s21 = ssub.s32 128, 128
      %22 = vsyncadd [#allocation3], %s21
      %s24 = sshll.u32 [#allocation2], 4
      %s25 = int_to_ptr.vmem [resolvable:$true] %s24
      %27 = dma.hbm_to_vmem [thread:$0]  %s0, 128, %s25, [#allocation3]
    $region5: #{tpu_custom_call.1} parent=1 // pred_fallthru
      _
    // Predicated region
    $region6: #{tpu_custom_call.1} parent=1 // pred_check
      _
    $region7: #{tpu_custom_call.1} parent=1 // pred_check_branch
      %29 = sbr.rel (0) target = $region9
    $region8: #{tpu_custom_call.1} parent=1 // pred_region
      %s31 = ssub.s32 128, 128
      %32 = vsyncadd [#allocation6], %s31
      %s34 = sshll.u32 [#allocation5], 4
      %s35 = int_to_ptr.vmem [resolvable:$true] %s34
      %37 = dma.hbm_to_vmem [thread:$0]  %s1, 128, %s35, [#allocation6]
    $region9: #{tpu_custom_call.1} parent=1 // pred_fallthru
      _
    // Predicated region
    $region10: #{tpu_custom_call.1} parent=1 // pred_check
      _
    $region11: #{tpu_custom_call.1} parent=1 // pred_check_branch
      %39 = sbr.rel (0) target = $region13
    $region12: #{tpu_custom_call.1} parent=1 // pred_region
      %s41 = ssub.s32 128, 128
      %42 = vsyncadd [#allocation6], %s41
      %s44 = sshll.u32 [#allocation7], 4
      %s45 = int_to_ptr.vmem [resolvable:$true] %s44
      %47 = dma.hbm_to_vmem [thread:$0]  %s2, 128, %s45, [#allocation6]
    $region13: #{tpu_custom_call.1} parent=1 // pred_fallthru
      _
    // Predicated region
    $region14: #{tpu_custom_call.1} parent=1 // pred_check
      _
    $region15: #{tpu_custom_call.1} parent=1 // pred_check_branch
      %49 = sbr.rel (0) target = $region17
    $region16: #{tpu_custom_call.1} parent=1 // pred_region
      %s51 = ssub.s32 256, 256
      %52 = vsyncadd [#allocation9], %s51
      %s53 = sshll.u32 [#allocation8], 4
      %s54 = int_to_ptr.vmem [resolvable:$true] %s53
      %59 = dma.hbm_to_vmem [thread:$0]  %s3, 256, %s54, [#allocation9], 128, 128, 8
    $region17: #{tpu_custom_call.1} parent=1 // pred_fallthru
      _
    // Predicated region
    $region18: #{tpu_custom_call.1} parent=1 // pred_check
      _
    $region19: #{tpu_custom_call.1} parent=1 // pred_check_branch
      %61 = sbr.rel (0) target = $region21
    $region20: #{tpu_custom_call.1} parent=1 // pred_region
      %s63 = ssub.s32 512, 512
      %64 = vsyncadd [#allocation9], %s63
      %s65 = sshll.u32 [#allocation10], 4
      %s66 = int_to_ptr.vmem [resolvable:$true] %s65
      %71 = dma.hbm_to_vmem [thread:$0]  %s4, 512, %s66, [#allocation9], 128, 128, 8
    $region21: #{tpu_custom_call.1} parent=1 // pred_fallthru
      _
    // Predicated region
    $region22: #{tpu_custom_call.1} parent=1 // pred_check
      _
    $region23: #{tpu_custom_call.1} parent=1 // pred_check_branch
      %73 = sbr.rel (0) target = $region25
    $region24: #{tpu_custom_call.1} parent=1 // pred_region
      _
    $region25: #{tpu_custom_call.1} parent=1 // pred_fallthru
      _
    // Predicated region
    $region26: #{tpu_custom_call.1} parent=1 // pred_check
      _
    $region27: #{tpu_custom_call.1} parent=1 // pred_check_branch
      %75 = sbr.rel (0) target = $region29
    $region28: #{tpu_custom_call.1} parent=1 // pred_region
      %76 = dma.done [#allocation3], 128
    $region29: #{tpu_custom_call.1} parent=1 // pred_fallthru
      _
    // Predicated region
    $region30: #{tpu_custom_call.1} parent=1 // pred_check
      _
    $region31: #{tpu_custom_call.1} parent=1 // pred_check_branch
      %78 = sbr.rel (0) target = $region33
    $region32: #{tpu_custom_call.1} parent=1 // pred_region
      %79 = dma.done [#allocation6], 128
    $region33: #{tpu_custom_call.1} parent=1 // pred_fallthru
      _
    // Predicated region
    $region34: #{tpu_custom_call.1} parent=1 // pred_check
      _
    $region35: #{tpu_custom_call.1} parent=1 // pred_check_branch
      %81 = sbr.rel (0) target = $region37
    $region36: #{tpu_custom_call.1} parent=1 // pred_region
      %82 = dma.done [#allocation6], 128
    $region37: #{tpu_custom_call.1} parent=1 // pred_fallthru
      _
    // Predicated region
    $region38: #{tpu_custom_call.1} parent=1 // pred_check
      _
    $region39: #{tpu_custom_call.1} parent=1 // pred_check_branch
      %84 = sbr.rel (0) target = $region41
    $region40: #{tpu_custom_call.1} parent=1 // pred_region
      %85 = dma.done [#allocation9], 256
    $region41: #{tpu_custom_call.1} parent=1 // pred_fallthru
      _
    // Predicated region
    $region42: #{tpu_custom_call.1} parent=1 // pred_check
      _
    $region43: #{tpu_custom_call.1} parent=1 // pred_check_branch
      %87 = sbr.rel (0) target = $region45
    $region44: #{tpu_custom_call.1} parent=1 // pred_region
      %88 = dma.done [#allocation9], 512
    $region45: #{tpu_custom_call.1} parent=1 // pred_fallthru
      _
    %v89 = vld [vmem:[#allocation2] sm:$0xff]
    %v90 = vld [vmem:[#allocation8] sm:$0xff]
    %v91 = vld [vmem:[#allocation8 + $0x8] sm:$0xff]
    %v92 = vld [vmem:[#allocation5] sm:$0xff]
    %v93 = vld [vmem:[#allocation10] sm:$0xff]
    %v94 = vld [vmem:[#allocation10 + $0x8] sm:$0xff]
    %v95 = vld [vmem:[#allocation10 + $0x10] sm:$0xff]
    %v96 = vld [vmem:[#allocation10 + $0x18] sm:$0xff]
    %vm97 = vcmask 261120
    %v99 = vsel %vm97, %v92, 0
    %101 = vmatprep.subr.mxu0 0.0
    %102 = vmatpush1.msra.mxu0 %v93
    %103 = vmatprep.subr.mxu0 0.0
    %104 = vmatpush1.msra.mxu0 %v94
    %105 = vmatprep.subr.mxu0 0.0
    %106 = vmatpush1.msra.mxu0 %v95
    %107 = vmatprep.subr.mxu0 0.0
    %108 = vmatpush1.msra.mxu0 %v96
    %109 = vmatprep.subr.mxu0 0.0
    %110 = vmatpush1.msra.mxu0 0.0
    %111 = vmatprep.subr.mxu0 0.0
    %112 = vmatpush1.msra.mxu0 0.0
    %113 = vmatprep.subr.mxu0 0.0
    %114 = vmatpush1.msra.mxu0 0.0
    %115 = vmatprep.subr.mxu0 0.0
    %116 = vmatpush1.msra.mxu0 0.0
    %117 = vmatprep.subr.mxu0 0.0
    %118 = vmatpush1.msra.mxu0 0.0
    %119 = vmatprep.subr.mxu0 0.0
    %120 = vmatpush1.msra.mxu0 0.0
    %121 = vmatprep.subr.mxu0 0.0
    %122 = vmatpush1.msra.mxu0 0.0
    %123 = vmatprep.subr.mxu0 0.0
    %124 = vmatpush1.msra.mxu0 0.0
    %125 = vmatprep.subr.mxu0 0.0
    %126 = vmatpush1.msra.mxu0 0.0
    %127 = vmatprep.subr.mxu0 0.0
    %128 = vmatpush1.msra.mxu0 0.0
    %129 = vmatprep.subr.mxu0 0.0
    %130 = vmatpush1.msra.mxu0 0.0
    %131 = vmatprep.subr.mxu0 0.0
    %132 = vmatpush1.msra.mxu0 0.0
    %133 = vmatprep.subr.mxu0 0.0
    %134 = vmatpush1.msra.mxu0 0.0
    %135 = vmatprep.subr.mxu0 0.0
    %136 = vmatpush1.msra.mxu0 0.0
    %137 = vmatprep.subr.mxu0 0.0
    %138 = vmatpush1.msra.mxu0 0.0
    %139 = vmatprep.subr.mxu0 0.0
    %140 = vmatpush1.msra.mxu0 0.0
    %141 = vmatprep.subr.mxu0 0.0
    %142 = vmatpush1.msra.mxu0 0.0
    %143 = vmatprep.subr.mxu0 0.0
    %144 = vmatpush1.msra.mxu0 0.0
    %145 = vmatprep.subr.mxu0 0.0
    %146 = vmatpush1.msra.mxu0 0.0
    %147 = vmatprep.subr.mxu0 0.0
    %148 = vmatpush1.msra.mxu0 0.0
    %149 = vmatprep.subr.mxu0 0.0
    %150 = vmatpush1.msra.mxu0 0.0
    %151 = vmatprep.subr.mxu0 0.0
    %152 = vmatpush1.msra.mxu0 0.0
    %153 = vmatprep.subr.mxu0 0.0
    %154 = vmatpush1.msra.mxu0 0.0
    %155 = vmatprep.subr.mxu0 0.0
    %156 = vmatpush1.msra.mxu0 0.0
    %157 = vmatprep.subr.mxu0 0.0
    %158 = vmatpush1.msra.mxu0 0.0
    %159 = vmatprep.subr.mxu0 0.0
    %160 = vmatpush1.msra.mxu0 0.0
    %161 = vmatprep.subr.mxu0 0.0
    %162 = vmatpush1.msra.mxu0 0.0
    %163 = vmatprep.subr.mxu0 0.0
    %164 = vmatpush1.msra.mxu0 0.0
    %165 = vmatprep.mubr.f32.mxu0 0.0
    %166 = vmatmul.mubr.f32.gmra.mrb[0].mxu0 %v99
    %v167 = vpop.f32.mrb[0].mxu0
    %v168 = vadd.f32 0.0, %v167
    %v169 = vpop.f32.mrb[0].mxu0
    %170 = vdwg.mxu0
    %vm171 = vcmask 130048
    %v173 = vsel %vm171, %v89, 0
    %175 = vmatprep.subr.mxu0 0.0
    %176 = vmatpush1.msra.mxu0 %v90
    %177 = vmatprep.subr.mxu0 0.0
    %178 = vmatpush1.msra.mxu0 %v91
    %179 = vmatprep.subr.mxu0 0.0
    %180 = vmatpush1.msra.mxu0 0.0
    %181 = vmatprep.subr.mxu0 0.0
    %182 = vmatpush1.msra.mxu0 0.0
    %183 = vmatprep.subr.mxu0 0.0
    %184 = vmatpush1.msra.mxu0 0.0
    %185 = vmatprep.subr.mxu0 0.0
    %186 = vmatpush1.msra.mxu0 0.0
    %187 = vmatprep.subr.mxu0 0.0
    %188 = vmatpush1.msra.mxu0 0.0
    %189 = vmatprep.subr.mxu0 0.0
    %190 = vmatpush1.msra.mxu0 0.0
    %191 = vmatprep.subr.mxu0 0.0
    %192 = vmatpush1.msra.mxu0 0.0
    %193 = vmatprep.subr.mxu0 0.0
    %194 = vmatpush1.msra.mxu0 0.0
    %195 = vmatprep.subr.mxu0 0.0
    %196 = vmatpush1.msra.mxu0 0.0
    %197 = vmatprep.subr.mxu0 0.0
    %198 = vmatpush1.msra.mxu0 0.0
    %199 = vmatprep.subr.mxu0 0.0
    %200 = vmatpush1.msra.mxu0 0.0
    %201 = vmatprep.subr.mxu0 0.0
    %202 = vmatpush1.msra.mxu0 0.0
    %203 = vmatprep.subr.mxu0 0.0
    %204 = vmatpush1.msra.mxu0 0.0
    %205 = vmatprep.subr.mxu0 0.0
    %206 = vmatpush1.msra.mxu0 0.0
    %207 = vmatprep.subr.mxu0 0.0
    %208 = vmatpush1.msra.mxu0 0.0
    %209 = vmatprep.subr.mxu0 0.0
    %210 = vmatpush1.msra.mxu0 0.0
    %211 = vmatprep.subr.mxu0 0.0
    %212 = vmatpush1.msra.mxu0 0.0
    %213 = vmatprep.subr.mxu0 0.0
    %214 = vmatpush1.msra.mxu0 0.0
    %215 = vmatprep.subr.mxu0 0.0
    %216 = vmatpush1.msra.mxu0 0.0
    %217 = vmatprep.subr.mxu0 0.0
    %218 = vmatpush1.msra.mxu0 0.0
    %219 = vmatprep.subr.mxu0 0.0
    %220 = vmatpush1.msra.mxu0 0.0
    %221 = vmatprep.subr.mxu0 0.0
    %222 = vmatpush1.msra.mxu0 0.0
    %223 = vmatprep.subr.mxu0 0.0
    %224 = vmatpush1.msra.mxu0 0.0
    %225 = vmatprep.subr.mxu0 0.0
    %226 = vmatpush1.msra.mxu0 0.0
    %227 = vmatprep.subr.mxu0 0.0
    %228 = vmatpush1.msra.mxu0 0.0
    %229 = vmatprep.subr.mxu0 0.0
    %230 = vmatpush1.msra.mxu0 0.0
    %231 = vmatprep.subr.mxu0 0.0
    %232 = vmatpush1.msra.mxu0 0.0
    %233 = vmatprep.subr.mxu0 0.0
    %234 = vmatpush1.msra.mxu0 0.0
    %235 = vmatprep.subr.mxu0 0.0
    %236 = vmatpush1.msra.mxu0 0.0
    %237 = vmatprep.subr.mxu0 0.0
    %238 = vmatpush1.msra.mxu0 0.0
    %239 = vmatprep.mubr.f32.mxu0 0.0
    %240 = vmatmul.mubr.f32.gmra.mrb[0].mxu0 %v173
    %v241 = vpop.f32.mrb[0].mxu0
    %v242 = vadd.f32 %v168, %v241
    %v243 = vpop.f32.mrb[0].mxu0
    %244 = vdwg.mxu0
    %v245 = vld [vmem:[%s5] sm:$0x1]
    %v247 = vlaneseq
    %v248 = vshrl.u32 %v247, 7
    %v249 = vsub.s32 0, %v248
    %v250 = vrot.slane %v245, %v249
    %v252 = vadd.f32 %v242, %v250
    %v253 = vxor.u32 %v252, 2147483648
    %v254 = vmul.f32 %v253, 1.442695
    %v255 = vpow.pop %v254
    %v256 = vadd.f32 %v255, 1.0
    %v257 = vrcp.pop %v256
    %v258 = vmul.f32 1.0, %v257
    %v259 = vtanh.pop %v252
    %v260 = vld [vmem:[#allocation7] sm:$0xff]
    %262 = vrot.lane.b32.xlu0 %v260, 32
    %v263 = vpop.permute.xlu0 %262
    %v265 = vmul.f32 %v258, %v263
    %267 = vrot.lane.b32.xlu0 %v259, 32
    %v268 = vpop.permute.xlu0 %267
    %v270 = vmul.f32 %v258, %v268
    %272 = vrot.lane.b32.xlu0 %v270, 32
    %v273 = vpop.permute.xlu0 %272
    %v275 = vadd.f32 %v265, %v273
    %v276 = vtanh.pop %v275
    %278 = vrot.lane.b32.xlu0 %v276, 32
    %v279 = vpop.permute.xlu0 %278
    %v281 = vmul.f32 %v258, %v279
    %283 = vrot.lane.b32.xlu0 %v275, 96
    %v284 = vpop.permute.xlu0 %283
    %286 = vst.msk [vmem:[#allocation12] sm:$0xff] %vm97, %v284
    %288 = vrot.lane.b32.xlu0 %v281, 64
    %v289 = vpop.permute.xlu0 %288
    %291 = vst.msk [vmem:[#allocation11] sm:$0xff] %vm97, %v289
    // Predicated region
    $region46: #{tpu_custom_call.1} parent=1 // pred_check
      _
    $region47: #{tpu_custom_call.1} parent=1 // pred_check_branch
      %293 = sbr.rel (0) target = $region49
    $region48: #{tpu_custom_call.1} parent=1 // pred_region
      %s295 = ssub.s32 128, 128
      %296 = vsyncadd [#allocation4], %s295
      %s298 = sshll.u32 [#allocation11], 4
      %s299 = int_to_ptr.vmem [resolvable:$true] %s298
      %301 = dma.vmem_to_hbm [thread:$0]  %s299, 128, %s6, [#allocation4]
    $region49: #{tpu_custom_call.1} parent=1 // pred_fallthru
      _
    // Predicated region
    $region50: #{tpu_custom_call.1} parent=1 // pred_check
      _
    $region51: #{tpu_custom_call.1} parent=1 // pred_check_branch
      %303 = sbr.rel (0) target = $region53
    $region52: #{tpu_custom_call.1} parent=1 // pred_region
      %s305 = ssub.s32 128, 128
      %306 = vsyncadd [#allocation13], %s305
      %s308 = sshll.u32 [#allocation12], 4
      %s309 = int_to_ptr.vmem [resolvable:$true] %s308
      %311 = dma.vmem_to_hbm [thread:$0]  %s309, 128, %s7, [#allocation13]
    $region53: #{tpu_custom_call.1} parent=1 // pred_fallthru
      _
    // Predicated region
    $region54: #{tpu_custom_call.1} parent=1 // pred_check
      _
    $region55: #{tpu_custom_call.1} parent=1 // pred_check_branch
      %313 = sbr.rel (0) target = $region57
    $region56: #{tpu_custom_call.1} parent=1 // pred_region
      %314 = dma.done [#allocation4], 128
    $region57: #{tpu_custom_call.1} parent=1 // pred_fallthru
      _
    // Predicated region
    $region58: #{tpu_custom_call.1} parent=1 // pred_check
      _
    $region59: #{tpu_custom_call.1} parent=1 // pred_check_branch
      %316 = sbr.rel (0) target = $region61
    $region60: #{tpu_custom_call.1} parent=1 // pred_region
      %317 = dma.done [#allocation13], 128
    $region61: #{tpu_custom_call.1} parent=1 // pred_fallthru
      _
    %318 = vsyncpa [#allocation3], 1
    %319 = vsyncpa [#allocation6], 1
    %320 = vsyncpa [#allocation9], 1
    %321 = vsyncpa [#allocation4], 1
    %322 = vsyncpa [#allocation13], 1

</llo_original>
